<compile_context>
chip_gen: v7x
topology: tpu7x:2x2x1
jax: 0.10.0
libtpu: 0.0.40
codegen_flags: <defaults>
</compile_context>

<pallas_src>
import functools

import jax
import jax.numpy as jnp
from jax.experimental import pallas as pl
from jax.experimental.pallas import tpu as pltpu


def _additive_attention_kernel(
    q_ref, k_ref, v_ref, wq_ref, wk_ref, wv_ref,      # inputs (pre-cast)
    o_ref,                                            # output
    qp_ref, m_ref, l_ref, acc_ref,                    # VMEM scratch
    *, compute_dtype,
):
    ki = pl.program_id(2)
    nk_steps = pl.num_programs(2)
    n_chunks = wq_ref.shape[0]                        # hidden = n_chunks * th

    # ---- first k tile for this (batch, q-tile): init online-softmax state and
    #      project the queries once (scratch persists across the k grid axis).
    @pl.when(ki == 0)
    def _init():
        m_ref[...] = jnp.full(m_ref.shape, -jnp.inf, m_ref.dtype)
        l_ref[...] = jnp.zeros(l_ref.shape, l_ref.dtype)
        acc_ref[...] = jnp.zeros(acc_ref.shape, acc_ref.dtype)
        q = q_ref[0]                                              # (Tq, q)

        def project(ci, carry):
            qp_ref[ci] = jnp.dot(
                q, wq_ref[ci],
                preferred_element_type=jnp.float32).astype(compute_dtype)
            return carry

        if n_chunks == 1:
            project(0, 0)
        else:
            jax.lax.fori_loop(0, n_chunks, project, 0)

    k = k_ref[0]                                                  # (Tk, k)
    tq = qp_ref.shape[1]
    tk = k.shape[0]

    # ---- additive scores: sum_h tanh(qp + kp) * wv, streamed over hidden
    #      chunks.  fori_loop bounds the live (Tq, Tk, th) intermediate to a
    #      single chunk; the kp chunk is recomputed per chunk on the MXU (the
    #      kernel is EUP/tanh bound, so the MXU has slack).  The multiply stays
    #      in compute_dtype; only the accumulation is f32.
    def chunk_scores(ci, scores):
        kp_c = jnp.dot(k, wk_ref[ci],
                       preferred_element_type=jnp.float32
                       ).astype(compute_dtype)                    # (Tk, th)
        qp_c = qp_ref[ci]                                         # (Tq, th)
        wv_c = wv_ref[ci]                                         # (1, th)
        feats = jnp.tanh(qp_c[:, None, :] + kp_c[None, :, :])     # (Tq,Tk,th)
        return scores + jnp.sum(feats * wv_c, axis=-1, dtype=jnp.float32)

    scores0 = jnp.zeros((tq, tk), jnp.float32)
    if n_chunks == 1:
        scores = chunk_scores(0, scores0)
    else:
        scores = jax.lax.fori_loop(0, n_chunks, chunk_scores, scores0)

    # ---- flash-style online softmax over k tiles.
    m_prev = m_ref[...]
    m_new = jnp.maximum(m_prev, jnp.max(scores, axis=-1, keepdims=True))
    alpha = jnp.exp(m_prev - m_new)
    p = jnp.exp(scores - m_new)                                   # (Tq, Tk) f32
    l_ref[...] = alpha * l_ref[...] + jnp.sum(p, axis=-1, keepdims=True)
    acc_ref[...] = alpha * acc_ref[...] + jnp.dot(
        p.astype(compute_dtype), v_ref[0], preferred_element_type=jnp.float32)
    m_ref[...] = m_new

    # TODO(synk): nn.Dropout on the attention weights is identity in eval mode;
    # a training-mode dropout mask (pltpu.prng_*) is not implemented.

    # ---- last k tile: normalize (exact division: one divide per q row per
    #      tile, negligible; keeps closer parity with torch softmax) and store.
    @pl.when(ki == nk_steps - 1)
    def _finalize():
        o_ref[0] = (acc_ref[...] / l_ref[...]).astype(o_ref.dtype)


def _pick_block(n, target, full_limit=512):
    """Tile size along a sequence axis.

    Prefers the largest divisor of n <= target that is a multiple of 128
    (lane-dense), then a multiple of 8 (sublane-aligned).  If neither exists
    and the axis is small, the full axis is used; large awkward axes raise so
    the caller pads instead of silently creating a huge VMEM block.
    """
    if n <= target:
        return n
    for mod in (128, 8):
        for cand in range(min(target, n), mod - 1, -1):
            if cand % mod == 0 and n % cand == 0:
                return cand
    if n <= full_limit:
        return n
    raise ValueError(
        f"sequence length {n} has no tile size that is a multiple of 8 and "
        f"<= {target}; pad the sequence length to a multiple of 8.")


def _pick_chunk(hidden, target):
    """Largest divisor of hidden <= target, preferring lane-aligned sizes."""
    if hidden <= target:
        return hidden
    divisors = [d for d in range(1, target + 1) if hidden % d == 0]
    for mod in (128, 8, 1):
        aligned = [d for d in divisors if d % mod == 0]
        if aligned:
            return max(aligned)
    return hidden  # unreachable


def _default_compute_dtype():
    # v5e has no bf16 VPU/EUP (bf16 elementwise/tanh gets emulated via casts),
    # so prefer f32 there; bf16 elsewhere (v6e/v7x).
    try:
        kind = jax.devices()[0].device_kind.lower()
    except Exception:
        return jnp.bfloat16
    if "v5 lite" in kind or "v5lite" in kind or "v5e" in kind:
        return jnp.float32
    return jnp.bfloat16


def additive_attention(queries, keys, values, wq, wk, wv, *,
                       block_q=128, block_k=128, block_h=128,
                       compute_dtype=None,
                       vmem_limit_bytes=48 * 1024 * 1024):
    """Additive attention forward.

    queries: (bs, n_q, q_size), keys: (bs, n_k, k_size), values: (bs, n_k, v_size)
    wq: (q_size, hidden), wk: (k_size, hidden)  -- PyTorch Linear weights, transposed
    wv: (1, hidden)                              -- PyTorch w_v.weight as-is

    compute_dtype=None auto-selects: f32 on v5e, bf16 on v6e/v7x.
    Tiling notes per generation:
      * v6e (128 MiB VMEM, 2x256 MXU): block_k=256 (and block_h=256) when n_k
        permits halves grid-step overhead and fills the MXU.
      * v7x (64 MiB VMEM, 2 TCs): keep tq=tk<=128, th<=128; note that only
        bs * (n_q / tq) >= 2 keeps both TensorCores busy -- shrink tq for
        single-batch single-q-tile shapes.
      * v5e: f32 path; drop block_k/block_h to 64 for very large hidden or
        raise vmem_limit_bytes.
    """
    bs, n_q, q_size = queries.shape
    _, n_k, k_size = keys.shape
    _, n_v, v_size = values.shape
    assert n_v == n_k, "n_k must equal n_v"
    hidden = wq.shape[1]
    assert wq.shape == (q_size, hidden)
    assert wk.shape == (k_size, hidden)
    assert wv.shape == (1, hidden)

    if compute_dtype is None:
        compute_dtype = _default_compute_dtype()
    out_dtype = queries.dtype

    # Pre-cast once in the wrapper: halves weight/activation VMEM + HBM DMA on
    # the bf16 path and removes per-grid-step VPU casts inside the kernel.
    queries = queries.astype(compute_dtype)
    keys = keys.astype(compute_dtype)
    values = values.astype(compute_dtype)
    wq = wq.astype(compute_dtype)
    wk = wk.astype(compute_dtype)
    wv = wv.astype(compute_dtype)

    # Lane-dense output: pad v to a multiple of 128 when large enough that the
    # padding overhead is small (avoids masked vst.msk partial stores).
    v_size_k = v_size
    if v_size >= 128 and v_size % 128 != 0:
        v_size_k = ((v_size + 127) // 128) * 128
        values = jnp.pad(values, ((0, 0), (0, 0), (0, v_size_k - v_size)))

    tq = _pick_block(n_q, block_q)
    tk = _pick_block(n_k, block_k)
    th = _pick_chunk(hidden, block_h)
    n_chunks = hidden // th

    # Put the hidden-chunk index on a LEADING axis so all per-chunk indexing in
    # the kernel is dynamic first-axis indexing (no dynamic lane slicing).
    wq_c = wq.reshape(q_size, n_chunks, th).transpose(1, 0, 2)   # (nc, q, th)
    wk_c = wk.reshape(k_size, n_chunks, th).transpose(1, 0, 2)   # (nc, k, th)
    wv_c = wv.reshape(n_chunks, 1, th)                           # (nc, 1, th)

    q_steps, k_steps = n_q // tq, n_k // tk
    grid = (bs, q_steps, k_steps)

    kernel = functools.partial(_additive_attention_kernel,
                               compute_dtype=compute_dtype)

    cparams = dict(dimension_semantics=("parallel", "parallel", "arbitrary"))
    if vmem_limit_bytes is not None:
        cparams["vmem_limit_bytes"] = int(vmem_limit_bytes)

    itemsize = jnp.dtype(compute_dtype).itemsize
    cost = pl.CostEstimate(
        flops=int(2 * bs * (n_q * q_size * hidden              # qp
                            + q_steps * n_k * k_size * hidden  # kp (per q tile)
                            + n_q * n_k * hidden               # feats * wv
                            + n_q * n_k * v_size_k)),          # p @ v
        transcendentals=int(bs * n_q * n_k * (hidden + 1)),    # tanh + exp
        bytes_accessed=int(queries.size * itemsize
                           + q_steps * (keys.size + values.size) * itemsize
                           + (wq.size + wk.size + wv.size) * itemsize
                           + bs * n_q * v_size_k * jnp.dtype(out_dtype).itemsize),
    )

    out = pl.pallas_call(
        kernel,
        out_shape=jax.ShapeDtypeStruct((bs, n_q, v_size_k), out_dtype),
        grid_spec=pltpu.PrefetchScalarGridSpec(
            num_scalar_prefetch=0,
            grid=grid,
            in_specs=[
                pl.BlockSpec((1, tq, q_size), lambda b, qi, ki: (b, qi, 0)),
                pl.BlockSpec((1, tk, k_size), lambda b, qi, ki: (b, ki, 0)),
                pl.BlockSpec((1, tk, v_size_k), lambda b, qi, ki: (b, ki, 0)),
                pl.BlockSpec((n_chunks, q_size, th), lambda b, qi, ki: (0, 0, 0)),
                pl.BlockSpec((n_chunks, k_size, th), lambda b, qi, ki: (0, 0, 0)),
                pl.BlockSpec((n_chunks, 1, th), lambda b, qi, ki: (0, 0, 0)),
            ],
            out_specs=pl.BlockSpec((1, tq, v_size_k), lambda b, qi, ki: (b, qi, 0)),
            scratch_shapes=[
                pltpu.VMEM((n_chunks, tq, th), compute_dtype),  # qp (per q tile)
                pltpu.VMEM((tq, 1), jnp.float32),               # running max m
                pltpu.VMEM((tq, 1), jnp.float32),               # running sum l
                pltpu.VMEM((tq, v_size_k), jnp.float32),        # output accumulator
            ],
        ),
        compiler_params=pltpu.CompilerParams(**cparams),
        cost_estimate=cost,
    )(queries, keys, values, wq_c, wk_c, wv_c)

    if v_size_k != v_size:
        out = out[..., :v_size]
    return out


if __name__ == "__main__":
    # Small deterministic example shapes consistent with the module's forward.
    bs, n_q, n_k = 2, 8, 8
    q_size, k_size, v_size, hidden = 16, 24, 12, 32

    key = jax.random.PRNGKey(0)
    kq, kk, kv, kwq, kwk, kwv = jax.random.split(key, 6)

    queries = jax.random.normal(kq, (bs, n_q, q_size), dtype=jnp.float32)
    keys = jax.random.normal(kk, (bs, n_k, k_size), dtype=jnp.float32)
    values = jax.random.normal(kv, (bs, n_k, v_size), dtype=jnp.float32)

    # Deterministic Linear weights (no bias). wq/wk stored (in, out); wv is the
    # PyTorch w_v.weight layout (1, hidden).
    wq = jax.random.normal(kwq, (q_size, hidden), dtype=jnp.float32) * 0.1
    wk = jax.random.normal(kwk, (k_size, hidden), dtype=jnp.float32) * 0.1
    wv = jax.random.normal(kwv, (1, hidden), dtype=jnp.float32) * 0.1

    # Plain-JAX reference (eval-mode dropout == identity).
    qp = jnp.einsum("bnq,qh->bnh", queries, wq)
    kp = jnp.einsum("bmk,kh->bmh", keys, wk)
    feats = jnp.tanh(qp[:, :, None, :] + kp[:, None, :, :])
    scores = jnp.einsum("bnmh,xh->bnm", feats, wv)
    attn = jax.nn.softmax(scores, axis=-1)
    ref = jnp.einsum("bnm,bmv->bnv", attn, values)

    # 1) f32 compute path (the one auto-picked on v5e) -- tight semantic check.
    out_f32 = additive_attention(queries, keys, values, wq, wk, wv,
                                 compute_dtype=jnp.float32)
    out_f32 = jax.block_until_ready(out_f32)
    assert out_f32.shape == (bs, n_q, v_size)
    assert jnp.allclose(out_f32, ref, atol=2e-3, rtol=2e-3)

    # 2) Auto compute_dtype (bf16 on v6e/v7x, f32 on v5e) -- relaxed tolerance.
    out_auto = additive_attention(queries, keys, values, wq, wk, wv)
    out_auto = jax.block_until_ready(out_auto)
    assert out_auto.shape == (bs, n_q, v_size)
    assert jnp.allclose(out_auto, ref, atol=5e-2, rtol=5e-2)

    print("KERNEL_OK")
</pallas_src>

<mosaic_0001>
module attributes {stable_mosaic.version = 11 : i64} {
  func.func @_additive_attention_kernel(%arg0: i32, %arg1: i32, %arg2: i32, %arg3: memref<1x8x16xf32, #tpu.memory_space<vmem>>, %arg4: memref<1x8x24xf32, #tpu.memory_space<vmem>>, %arg5: memref<1x8x12xf32, #tpu.memory_space<vmem>>, %arg6: memref<1x16x32xf32, #tpu.memory_space<vmem>>, %arg7: memref<1x24x32xf32, #tpu.memory_space<vmem>>, %arg8: memref<1x1x32xf32, #tpu.memory_space<vmem>>, %arg9: memref<1x8x12xf32, #tpu.memory_space<vmem>>, %arg10: memref<1x8x32xf32, #tpu.memory_space<vmem>>, %arg11: memref<8x1xf32, #tpu.memory_space<vmem>>, %arg12: memref<8x1xf32, #tpu.memory_space<vmem>>, %arg13: memref<8x12xf32, #tpu.memory_space<vmem>>) attributes {dimension_semantics = [#tpu.dimension_semantics<parallel>, #tpu.dimension_semantics<parallel>, #tpu.dimension_semantics<arbitrary>], iteration_bounds = array<i64: 2, 1, 1>, scalar_prefetch = 0 : i64, scratch_operands = 4 : i64, tpu.core_type = #tpu.core_type<tc>, window_params = [{transform_indices = @transform_0, window_bounds = array<i64: 1, 8, 16>}, {transform_indices = @transform_1, window_bounds = array<i64: 1, 8, 24>}, {transform_indices = @transform_2, window_bounds = array<i64: 1, 8, 12>}, {pipeline_mode = #tpu.pipeline_mode<synchronous>, transform_indices = @transform_3, window_bounds = array<i64: 1, 16, 32>}, {pipeline_mode = #tpu.pipeline_mode<synchronous>, transform_indices = @transform_4, window_bounds = array<i64: 1, 24, 32>}, {pipeline_mode = #tpu.pipeline_mode<synchronous>, transform_indices = @transform_5, window_bounds = array<i64: 1, 1, 32>}, {transform_indices = @transform_6, window_bounds = array<i64: 1, 8, 12>}]} {
    %c0_i32 = arith.constant 0 : i32
    %0 = arith.cmpi eq, %arg2, %c0_i32 : i32
    %1 = arith.extui %0 : i1 to i32
    %c0_i32_0 = arith.constant 0 : i32
    %2 = arith.cmpi ne, %1, %c0_i32_0 : i32
    scf.if %2 {
      %cst_34 = arith.constant 0xFF800000 : f32
      %51 = vector.broadcast %cst_34 : f32 to vector<8x1xf32>
      %c0_35 = arith.constant 0 : index
      %c0_36 = arith.constant 0 : index
      %52 = vector.load %arg11[%c0_35, %c0_36] : memref<8x1xf32, #tpu.memory_space<vmem>>, vector<8x1xf32>
      tpu.vector_store %arg11[%c0_35, %c0_36], %51 {strides = array<i32>} : memref<8x1xf32, #tpu.memory_space<vmem>>, vector<8x1xf32>,
      %cst_37 = arith.constant 0.000000e+00 : f32
      %53 = vector.broadcast %cst_37 : f32 to vector<8x1xf32>
      %c0_38 = arith.constant 0 : index
      %c0_39 = arith.constant 0 : index
      %54 = vector.load %arg12[%c0_38, %c0_39] : memref<8x1xf32, #tpu.memory_space<vmem>>, vector<8x1xf32>
      tpu.vector_store %arg12[%c0_38, %c0_39], %53 {strides = array<i32>} : memref<8x1xf32, #tpu.memory_space<vmem>>, vector<8x1xf32>,
      %cst_40 = arith.constant 0.000000e+00 : f32
      %55 = vector.broadcast %cst_40 : f32 to vector<8x12xf32>
      %c0_41 = arith.constant 0 : index
      %c0_42 = arith.constant 0 : index
      %56 = vector.load %arg13[%c0_41, %c0_42] : memref<8x12xf32, #tpu.memory_space<vmem>>, vector<8x12xf32>
      tpu.vector_store %arg13[%c0_41, %c0_42], %55 {strides = array<i32>} : memref<8x12xf32, #tpu.memory_space<vmem>>, vector<8x12xf32>,
      %c0_43 = arith.constant 0 : index
      %c0_44 = arith.constant 0 : index
      %c0_45 = arith.constant 0 : index
      %57 = vector.load %arg3[%c0_43, %c0_44, %c0_45] : memref<1x8x16xf32, #tpu.memory_space<vmem>>, vector<1x8x16xf32>
      %58 = vector.shape_cast %57 : vector<1x8x16xf32> to vector<8x16xf32>
      %c0_46 = arith.constant 0 : index
      %c0_47 = arith.constant 0 : index
      %c0_48 = arith.constant 0 : index
      %59 = vector.load %arg6[%c0_46, %c0_47, %c0_48] : memref<1x16x32xf32, #tpu.memory_space<vmem>>, vector<1x16x32xf32>
      %60 = vector.shape_cast %59 : vector<1x16x32xf32> to vector<16x32xf32>
      %cst_49 = arith.constant dense<0.000000e+00> : vector<8x32xf32>
      %61 = tpu.matmul %58, %60, %cst_49 {dimension_numbers = #tpu.dot_dimension_numbers<[1], [0], [0], [1], [0, 0, 1, 1], [], []>} : vector<8x16xf32>, vector<16x32xf32>, vector<8x32xf32> -> vector<8x32xf32>
      %c0_50 = arith.constant 0 : index
      %c0_51 = arith.constant 0 : index
      %c0_52 = arith.constant 0 : index
      %62 = vector.load %arg10[%c0_50, %c0_51, %c0_52] : memref<1x8x32xf32, #tpu.memory_space<vmem>>, vector<1x8x32xf32>
      %63 = vector.shape_cast %62 : vector<1x8x32xf32> to vector<8x32xf32>
      %64 = vector.shape_cast %61 : vector<8x32xf32> to vector<1x8x32xf32>
      tpu.vector_store %arg10[%c0_50, %c0_51, %c0_52], %64 {strides = array<i32>} : memref<1x8x32xf32, #tpu.memory_space<vmem>>, vector<1x8x32xf32>,
    } else {
    }
    %c0 = arith.constant 0 : index
    %c0_1 = arith.constant 0 : index
    %c0_2 = arith.constant 0 : index
    %3 = vector.load %arg4[%c0, %c0_1, %c0_2] : memref<1x8x24xf32, #tpu.memory_space<vmem>>, vector<1x8x24xf32>
    %4 = vector.shape_cast %3 : vector<1x8x24xf32> to vector<8x24xf32>
    %cst = arith.constant 0.000000e+00 : f32
    %5 = vector.broadcast %cst : f32 to vector<8x8xf32>
    %c0_3 = arith.constant 0 : index
    %c0_4 = arith.constant 0 : index
    %c0_5 = arith.constant 0 : index
    %6 = vector.load %arg7[%c0_3, %c0_4, %c0_5] : memref<1x24x32xf32, #tpu.memory_space<vmem>>, vector<1x24x32xf32>
    %7 = vector.shape_cast %6 : vector<1x24x32xf32> to vector<24x32xf32>
    %cst_6 = arith.constant dense<0.000000e+00> : vector<8x32xf32>
    %8 = tpu.matmul %4, %7, %cst_6 {dimension_numbers = #tpu.dot_dimension_numbers<[1], [0], [0], [1], [0, 0, 1, 1], [], []>} : vector<8x24xf32>, vector<24x32xf32>, vector<8x32xf32> -> vector<8x32xf32>
    %c0_7 = arith.constant 0 : index
    %c0_8 = arith.constant 0 : index
    %c0_9 = arith.constant 0 : index
    %9 = vector.load %arg10[%c0_7, %c0_8, %c0_9] : memref<1x8x32xf32, #tpu.memory_space<vmem>>, vector<1x8x32xf32>
    %10 = vector.shape_cast %9 : vector<1x8x32xf32> to vector<8x32xf32>
    %c0_10 = arith.constant 0 : index
    %c0_11 = arith.constant 0 : index
    %c0_12 = arith.constant 0 : index
    %11 = vector.load %arg8[%c0_10, %c0_11, %c0_12] : memref<1x1x32xf32, #tpu.memory_space<vmem>>, vector<1x1x32xf32>
    %12 = vector.shape_cast %11 : vector<1x1x32xf32> to vector<1x32xf32>
    %13 = vector.shape_cast %10 : vector<8x32xf32> to vector<8x1x32xf32>
    %14 = vector.shape_cast %8 : vector<8x32xf32> to vector<1x8x32xf32>
    %15 = vector.broadcast %13 : vector<8x1x32xf32> to vector<8x8x32xf32>
    %16 = vector.broadcast %14 : vector<1x8x32xf32> to vector<8x8x32xf32>
    %17 = arith.addf %15, %16 : vector<8x8x32xf32>
    %18 = math.tanh %17 : vector<8x8x32xf32>
    %19 = vector.shape_cast %12 : vector<1x32xf32> to vector<1x1x32xf32>
    %20 = vector.broadcast %19 : vector<1x1x32xf32> to vector<8x8x32xf32>
    %21 = arith.mulf %18, %20 : vector<8x8x32xf32>
    %cst_13 = arith.constant dense<0.000000e+00> : vector<8x8xf32>
    %22 = vector.multi_reduction <add>, %21, %cst_13 [2] : vector<8x8x32xf32> to vector<8x8xf32>
    %23 = arith.addf %5, %22 : vector<8x8xf32>
    %c0_14 = arith.constant 0 : index
    %c0_15 = arith.constant 0 : index
    %24 = vector.load %arg11[%c0_14, %c0_15] : memref<8x1xf32, #tpu.memory_space<vmem>>, vector<8x1xf32>
    %cst_16 = arith.constant dense<0xFF800000> : vector<8xf32>
    %25 = vector.multi_reduction <maximumf>, %23, %cst_16 [1] : vector<8x8xf32> to vector<8xf32>
    %26 = vector.shape_cast %25 : vector<8xf32> to vector<8x1xf32>
    %27 = arith.maximumf %24, %26 : vector<8x1xf32>
    %28 = arith.subf %24, %27 : vector<8x1xf32>
    %29 = math.exp %28 : vector<8x1xf32>
    %30 = vector.broadcast %27 : vector<8x1xf32> to vector<8x8xf32>
    %31 = arith.subf %23, %30 : vector<8x8xf32>
    %32 = math.exp %31 : vector<8x8xf32>
    %c0_17 = arith.constant 0 : index
    %c0_18 = arith.constant 0 : index
    %33 = vector.load %arg12[%c0_17, %c0_18] : memref<8x1xf32, #tpu.memory_space<vmem>>, vector<8x1xf32>
    %34 = arith.mulf %29, %33 : vector<8x1xf32>
    %cst_19 = arith.constant dense<0.000000e+00> : vector<8xf32>
    %35 = vector.multi_reduction <add>, %32, %cst_19 [1] : vector<8x8xf32> to vector<8xf32>
    %36 = vector.shape_cast %35 : vector<8xf32> to vector<8x1xf32>
    %37 = arith.addf %34, %36 : vector<8x1xf32>
    %c0_20 = arith.constant 0 : index
    %c0_21 = arith.constant 0 : index
    %38 = vector.load %arg12[%c0_20, %c0_21] : memref<8x1xf32, #tpu.memory_space<vmem>>, vector<8x1xf32>
    tpu.vector_store %arg12[%c0_20, %c0_21], %37 {strides = array<i32>} : memref<8x1xf32, #tpu.memory_space<vmem>>, vector<8x1xf32>,
    %c0_22 = arith.constant 0 : index
    %c0_23 = arith.constant 0 : index
    %39 = vector.load %arg13[%c0_22, %c0_23] : memref<8x12xf32, #tpu.memory_space<vmem>>, vector<8x12xf32>
    %40 = vector.broadcast %29 : vector<8x1xf32> to vector<8x12xf32>
    %41 = arith.mulf %40, %39 : vector<8x12xf32>
    %c0_24 = arith.constant 0 : index
    %c0_25 = arith.constant 0 : index
    %c0_26 = arith.constant 0 : index
    %42 = vector.load %arg5[%c0_24, %c0_25, %c0_26] : memref<1x8x12xf32, #tpu.memory_space<vmem>>, vector<1x8x12xf32>
    %43 = vector.shape_cast %42 : vector<1x8x12xf32> to vector<8x12xf32>
    %cst_27 = arith.constant dense<0.000000e+00> : vector<8x12xf32>
    %44 = tpu.matmul %32, %43, %cst_27 {dimension_numbers = #tpu.dot_dimension_numbers<[1], [0], [0], [1], [0, 0, 1, 1], [], []>} : vector<8x8xf32>, vector<8x12xf32>, vector<8x12xf32> -> vector<8x12xf32>
    %45 = arith.addf %41, %44 : vector<8x12xf32>
    %c0_28 = arith.constant 0 : index
    %c0_29 = arith.constant 0 : index
    %46 = vector.load %arg13[%c0_28, %c0_29] : memref<8x12xf32, #tpu.memory_space<vmem>>, vector<8x12xf32>
    tpu.vector_store %arg13[%c0_28, %c0_29], %45 {strides = array<i32>} : memref<8x12xf32, #tpu.memory_space<vmem>>, vector<8x12xf32>,
    %c0_30 = arith.constant 0 : index
    %c0_31 = arith.constant 0 : index
    %47 = vector.load %arg11[%c0_30, %c0_31] : memref<8x1xf32, #tpu.memory_space<vmem>>, vector<8x1xf32>
    tpu.vector_store %arg11[%c0_30, %c0_31], %27 {strides = array<i32>} : memref<8x1xf32, #tpu.memory_space<vmem>>, vector<8x1xf32>,
    %c0_i32_32 = arith.constant 0 : i32
    %48 = arith.cmpi eq, %arg2, %c0_i32_32 : i32
    %49 = arith.extui %48 : i1 to i32
    %c0_i32_33 = arith.constant 0 : i32
    %50 = arith.cmpi ne, %49, %c0_i32_33 : i32
    scf.if %50 {
      %c0_34 = arith.constant 0 : index
      %c0_35 = arith.constant 0 : index
      %51 = vector.load %arg13[%c0_34, %c0_35] : memref<8x12xf32, #tpu.memory_space<vmem>>, vector<8x12xf32>
      %c0_36 = arith.constant 0 : index
      %c0_37 = arith.constant 0 : index
      %52 = vector.load %arg12[%c0_36, %c0_37] : memref<8x1xf32, #tpu.memory_space<vmem>>, vector<8x1xf32>
      %53 = vector.broadcast %52 : vector<8x1xf32> to vector<8x12xf32>
      %54 = arith.divf %51, %53 : vector<8x12xf32>
      %c0_38 = arith.constant 0 : index
      %c0_39 = arith.constant 0 : index
      %c0_40 = arith.constant 0 : index
      %55 = vector.load %arg9[%c0_38, %c0_39, %c0_40] : memref<1x8x12xf32, #tpu.memory_space<vmem>>, vector<1x8x12xf32>
      %56 = vector.shape_cast %55 : vector<1x8x12xf32> to vector<8x12xf32>
      %57 = vector.shape_cast %54 : vector<8x12xf32> to vector<1x8x12xf32>
      tpu.vector_store %arg9[%c0_38, %c0_39, %c0_40], %57 {strides = array<i32>} : memref<1x8x12xf32, #tpu.memory_space<vmem>>, vector<1x8x12xf32>,
    } else {
    }
    return
  }
  func.func @transform_0(%arg0: i32, %arg1: i32, %arg2: i32) -> (i32, i32, i32) {
    %c0_i32 = arith.constant 0 : i32
    %c0_i32_0 = arith.constant 0 : i32
    return %arg0, %arg1, %c0_i32 : i32, i32, i32
  }
  func.func @transform_1(%arg0: i32, %arg1: i32, %arg2: i32) -> (i32, i32, i32) {
    %c0_i32 = arith.constant 0 : i32
    %c0_i32_0 = arith.constant 0 : i32
    return %arg0, %arg2, %c0_i32 : i32, i32, i32
  }
  func.func @transform_2(%arg0: i32, %arg1: i32, %arg2: i32) -> (i32, i32, i32) {
    %c0_i32 = arith.constant 0 : i32
    %c0_i32_0 = arith.constant 0 : i32
    return %arg0, %arg2, %c0_i32 : i32, i32, i32
  }
  func.func @transform_3(%arg0: i32, %arg1: i32, %arg2: i32) -> (i32, i32, i32) {
    %c0_i32 = arith.constant 0 : i32
    %c0_i32_0 = arith.constant 0 : i32
    %c0_i32_1 = arith.constant 0 : i32
    %c0_i32_2 = arith.constant 0 : i32
    return %c0_i32, %c0_i32_0, %c0_i32_1 : i32, i32, i32
  }
  func.func @transform_4(%arg0: i32, %arg1: i32, %arg2: i32) -> (i32, i32, i32) {
    %c0_i32 = arith.constant 0 : i32
    %c0_i32_0 = arith.constant 0 : i32
    %c0_i32_1 = arith.constant 0 : i32
    %c0_i32_2 = arith.constant 0 : i32
    return %c0_i32, %c0_i32_0, %c0_i32_1 : i32, i32, i32
  }
  func.func @transform_5(%arg0: i32, %arg1: i32, %arg2: i32) -> (i32, i32, i32) {
    %c0_i32 = arith.constant 0 : i32
    %c0_i32_0 = arith.constant 0 : i32
    %c0_i32_1 = arith.constant 0 : i32
    %c0_i32_2 = arith.constant 0 : i32
    return %c0_i32, %c0_i32_0, %c0_i32_1 : i32, i32, i32
  }
  func.func @transform_6(%arg0: i32, %arg1: i32, %arg2: i32) -> (i32, i32, i32) {
    %c0_i32 = arith.constant 0 : i32
    %c0_i32_0 = arith.constant 0 : i32
    return %arg0, %arg1, %c0_i32 : i32, i32, i32
  }
}

</mosaic_0001>

<llo_original>
// kernel: tpu_custom_call.1
$region0: #{tpu_custom_call.1}
  #allocation0 [shape = 'u32[]', space=smem, size = 0x4, offset = 0x4, fixed_abs, tag = 'smem constant byte address 0x4 - core index']
  #allocation1 [shape = 'u32[144,128]{1,0:T(1,128)}', space=vmem, size = 0x12000, scoped, tag = 'internal scratch']
  #allocation2 [shape = 'f32[1,8,32]{2,1,0:T(8,128)}', space=vmem, size = 0x1000, scoped, tag = 'scratch operand']
  #allocation3 [shape = 'f32[8,1]{1,0:T(8,128)}', space=vmem, size = 0x1000, scoped, tag = 'scratch operand']
  #allocation4 [shape = 'f32[8,1]{1,0:T(8,128)}', space=vmem, size = 0x1000, scoped, tag = 'scratch operand']
  #allocation5 [shape = 'f32[8,12]{1,0:T(8,128)}', space=vmem, size = 0x1000, scoped, tag = 'scratch operand']
  %s0 = inlined_call_operand.hbm [shape: f32[2,8,16], index: 0, kind: input, shape index: {}]
  %s1 = inlined_call_operand.hbm [shape: f32[2,8,24], index: 1, kind: input, shape index: {}]
  %s2 = inlined_call_operand.hbm [shape: f32[2,8,12], index: 2, kind: input, shape index: {}]
  %s3 = inlined_call_operand.hbm [shape: f32[1,16,32], index: 3, kind: input, shape index: {}]
  %s4 = inlined_call_operand.hbm [shape: f32[1,24,32], index: 4, kind: input, shape index: {}]
  %s5 = inlined_call_operand.vmem [shape: f32[1,1,32], index: 5, kind: input, shape index: {}]
  %s6 = inlined_call_operand.hbm [shape: f32[2,8,12], index: 6, kind: output, shape index: {}]
  %s7 = sld [smem:[#allocation0]]
  $region85: #{tpu_custom_call.1} parent=0
    _
  %s9 = ssub.s32 1, %s7
  %s10 = scalar_select 0, %s9, %s7
  $region1: #{tpu_custom_call.1} parent=0
    #allocation6 [shape = 'u8[8192]{0}', space=vmem, size = 0x2000, scoped, tag = 'input window, operand 0']
    #allocation7 [shape = 's32[2]{0}', space=sflag, size = 0x8, scoped, tag = 'scoped memory for tpu_custom_call.1']
    #allocation8 [shape = 's32[2]{0}', space=sflag, size = 0x8, scoped, tag = 'scoped memory for tpu_custom_call.1']
    #allocation9 [shape = 'u8[8192]{0}', space=vmem, size = 0x2000, scoped, tag = 'input window, operand 1']
    #allocation10 [shape = 's32[2]{0}', space=sflag, size = 0x8, scoped, tag = 'scoped memory for tpu_custom_call.1']
    #allocation11 [shape = 'u8[8192]{0}', space=vmem, size = 0x2000, scoped, tag = 'input window, operand 2']
    #allocation12 [shape = 'u8[8192]{0}', space=vmem, size = 0x2000, scoped, tag = 'input window, operand 3, single buffered']
    #allocation13 [shape = 's32[1]{0}', space=sflag, size = 0x4, scoped, tag = 'scoped memory for tpu_custom_call.1']
    #allocation14 [shape = 'u8[12288]{0}', space=vmem, size = 0x3000, scoped, tag = 'input window, operand 4, single buffered']
    #allocation15 [shape = 'u8[8192]{0}', space=vmem, size = 0x2000, scoped, tag = 'output window, operand 0']
    %11 = vsyncpa [#allocation7], 0
    %s12 = scalar_lea.sflag [#allocation7], 1
    %13 = vsyncpa %s12, 0
    %14 = vsyncpa [#allocation10], 0
    %s15 = scalar_lea.sflag [#allocation10], 1
    %16 = vsyncpa %s15, 0
    %17 = vsyncpa [#allocation13], 0
    %18 = vsyncpa [#allocation8], 0
    %s19 = scalar_lea.sflag [#allocation8], 1
    %20 = vsyncpa %s19, 0
    loop: start=0, step=1, limit=4
    $region2: #{tpu_custom_call.1} parent=1 // loop_pre_header
      _
    $region3: #{tpu_custom_call.1} parent=1 // loop_header
      %s22 = sphi 0, %s26
      %p23 = scmp.ge.s32.totalorder %s22, 4
      %s29 = sphi 0, %s48
      %s30 = sphi 0, %s44
      %s31 = sphi 0, %s40
      %s32 = sphi 0, %s29
      %s33 = sphi 0, %s30
      %s34 = sphi 0, %s31
      %s35 = sphi 0, %s32
      %s36 = sphi 0, %s33
      %s37 = sphi 0, %s34
      %s53 = sphi 0, %s55
      %s56 = sphi 0, %s53
      %s57 = sphi 0, %s56
      %s73 = sphi 0, %s57
      %s81 = sphi 0, %s83
      %s84 = sphi 0, %s81
      %s85 = sphi 0, %s84
      %s101 = sphi 0, %s85
      %s109 = sphi 0, %s111
      %s112 = sphi 0, %s109
      %s113 = sphi 0, %s112
      %s129 = sphi 0, %s113
      %s133 = sphi 0, %s133
      %s135 = sphi 0, %s133
      %s136 = sphi 0, %s135
      %s150 = sphi 0, %s136
      %s154 = sphi 0, %s154
      %s156 = sphi 0, %s154
      %s157 = sphi 0, %s156
      %s171 = sphi 0, %s157
      %s175 = sphi 0, %s175
      %s177 = sphi 0, %s175
      %s178 = sphi 0, %s177
      %s192 = sphi 0, %s178
      %s200 = sphi 0, %s202
      %s203 = sphi 0, %s200
      %s204 = sphi 0, %s203
      %s220 = sphi 0, %s204
    $region4: #{tpu_custom_call.1} parent=1 // loop_header_branch
      %25 = sbr.rel (%p23) target = $region8
    $region5: #{tpu_custom_call.1} parent=1 // loop_body
      %s27 = ssub.s32 %s22, 1
      %s28 = ssub.s32 %s22, 2
      %s38 = sadd.s32 1, %s31
      %p39 = scmp.ge.s32.totalorder %s38, 1
      %s40 = scalar_select %p39, 0, %s38
      %s41 = sadd.s32 1, %s30
      %s42 = scalar_select %p39, %s41, %s30
      %p43 = scmp.ge.s32.totalorder %s42, 1
      %s44 = scalar_select %p43, 0, %s42
      %s45 = sadd.s32 1, %s29
      %s46 = scalar_select %p43, %s45, %s29
      %p47 = scmp.ge.s32.totalorder %s46, 2
      %s48 = scalar_select %p47, 0, %s46
      %s49 = ssub.s32 %s29, %s48
      %s50 = ssub.s32 %s30, %s44
      %s51 = sor.u32 %s49, %s50
      %p52 = scmp.eq.s32.totalorder %s51, 0
      %s54 = sadd.s32 %s53, 1
      %s55 = scalar_select %p52, %s53, %s54
      %p58 = pneg %p52
      %p59 = scmp.eq.s32.totalorder %s22, 1
      %p60 = por %p58, %p59
      %p61 = scmp.ne.s32.totalorder %s53, %s56
      %p62 = scmp.eq.s32.totalorder %s22, 0
      %p63 = por %p61, %p62
      %p64 = scmp.ne.s32.totalorder %s53, %s56
      %p65 = scmp.eq.s32.totalorder %s27, 1
      %p66 = por %p64, %p65
      %p67 = scmp.ne.s32.totalorder %s56, %s57
      %p68 = scmp.eq.s32.totalorder %s27, 0
      %p69 = por %p67, %p68
      %p70 = scmp.ne.s32.totalorder %s56, %s57
      %p71 = scmp.eq.s32.totalorder %s28, 1
      %p72 = por %p70, %p71
      %p74 = scmp.ne.s32.totalorder %s57, %s73
      %p75 = scmp.eq.s32.totalorder %s28, 0
      %p76 = por %p74, %p75
      %s77 = ssub.s32 %s29, %s48
      %s78 = ssub.s32 %s31, %s40
      %s79 = sor.u32 %s77, %s78
      %p80 = scmp.eq.s32.totalorder %s79, 0
      %s82 = sadd.s32 %s81, 1
      %s83 = scalar_select %p80, %s81, %s82
      %p86 = pneg %p80
      %p87 = scmp.eq.s32.totalorder %s22, 1
      %p88 = por %p86, %p87
      %p89 = scmp.ne.s32.totalorder %s81, %s84
      %p90 = scmp.eq.s32.totalorder %s22, 0
      %p91 = por %p89, %p90
      %p92 = scmp.ne.s32.totalorder %s81, %s84
      %p93 = scmp.eq.s32.totalorder %s27, 1
      %p94 = por %p92, %p93
      %p95 = scmp.ne.s32.totalorder %s84, %s85
      %p96 = scmp.eq.s32.totalorder %s27, 0
      %p97 = por %p95, %p96
      %p98 = scmp.ne.s32.totalorder %s84, %s85
      %p99 = scmp.eq.s32.totalorder %s28, 1
      %p100 = por %p98, %p99
      %p102 = scmp.ne.s32.totalorder %s85, %s101
      %p103 = scmp.eq.s32.totalorder %s28, 0
      %p104 = por %p102, %p103
      %s105 = ssub.s32 %s29, %s48
      %s106 = ssub.s32 %s31, %s40
      %s107 = sor.u32 %s105, %s106
      %p108 = scmp.eq.s32.totalorder %s107, 0
      %s110 = sadd.s32 %s109, 1
      %s111 = scalar_select %p108, %s109, %s110
      %p114 = pneg %p108
      %p115 = scmp.eq.s32.totalorder %s22, 1
      %p116 = por %p114, %p115
      %p117 = scmp.ne.s32.totalorder %s109, %s112
      %p118 = scmp.eq.s32.totalorder %s22, 0
      %p119 = por %p117, %p118
      %p120 = scmp.ne.s32.totalorder %s109, %s112
      %p121 = scmp.eq.s32.totalorder %s27, 1
      %p122 = por %p120, %p121
      %p123 = scmp.ne.s32.totalorder %s112, %s113
      %p124 = scmp.eq.s32.totalorder %s27, 0
      %p125 = por %p123, %p124
      %p126 = scmp.ne.s32.totalorder %s112, %s113
      %p127 = scmp.eq.s32.totalorder %s28, 1
      %p128 = por %p126, %p127
      %p130 = scmp.ne.s32.totalorder %s113, %s129
      %p131 = scmp.eq.s32.totalorder %s28, 0
      %p132 = por %p130, %p131
      %s134 = sadd.s32 %s133, 1
      %p137 = scmp.eq.s32.totalorder %s22, 1
      %p138 = scmp.ne.s32.totalorder %s133, %s135
      %p139 = scmp.eq.s32.totalorder %s22, 0
      %p140 = por %p138, %p139
      %p141 = scmp.ne.s32.totalorder %s133, %s135
      %p142 = scmp.eq.s32.totalorder %s27, 1
      %p143 = por %p141, %p142
      %p144 = scmp.ne.s32.totalorder %s135, %s136
      %p145 = scmp.eq.s32.totalorder %s27, 0
      %p146 = por %p144, %p145
      %p147 = scmp.ne.s32.totalorder %s135, %s136
      %p148 = scmp.eq.s32.totalorder %s28, 1
      %p149 = por %p147, %p148
      %p151 = scmp.ne.s32.totalorder %s136, %s150
      %p152 = scmp.eq.s32.totalorder %s28, 0
      %p153 = por %p151, %p152
      %s155 = sadd.s32 %s154, 1
      %p158 = scmp.eq.s32.totalorder %s22, 1
      %p159 = scmp.ne.s32.totalorder %s154, %s156
      %p160 = scmp.eq.s32.totalorder %s22, 0
      %p161 = por %p159, %p160
      %p162 = scmp.ne.s32.totalorder %s154, %s156
      %p163 = scmp.eq.s32.totalorder %s27, 1
      %p164 = por %p162, %p163
      %p165 = scmp.ne.s32.totalorder %s156, %s157
      %p166 = scmp.eq.s32.totalorder %s27, 0
      %p167 = por %p165, %p166
      %p168 = scmp.ne.s32.totalorder %s156, %s157
      %p169 = scmp.eq.s32.totalorder %s28, 1
      %p170 = por %p168, %p169
      %p172 = scmp.ne.s32.totalorder %s157, %s171
      %p173 = scmp.eq.s32.totalorder %s28, 0
      %p174 = por %p172, %p173
      %s176 = sadd.s32 %s175, 1
      %p179 = scmp.eq.s32.totalorder %s22, 1
      %p180 = scmp.ne.s32.totalorder %s175, %s177
      %p181 = scmp.eq.s32.totalorder %s22, 0
      %p182 = por %p180, %p181
      %p183 = scmp.ne.s32.totalorder %s175, %s177
      %p184 = scmp.eq.s32.totalorder %s27, 1
      %p185 = por %p183, %p184
      %p186 = scmp.ne.s32.totalorder %s177, %s178
      %p187 = scmp.eq.s32.totalorder %s27, 0
      %p188 = por %p186, %p187
      %p189 = scmp.ne.s32.totalorder %s177, %s178
      %p190 = scmp.eq.s32.totalorder %s28, 1
      %p191 = por %p189, %p190
      %p193 = scmp.ne.s32.totalorder %s178, %s192
      %p194 = scmp.eq.s32.totalorder %s28, 0
      %p195 = por %p193, %p194
      %s196 = ssub.s32 %s29, %s48
      %s197 = ssub.s32 %s30, %s44
      %s198 = sor.u32 %s196, %s197
      %p199 = scmp.eq.s32.totalorder %s198, 0
      %s201 = sadd.s32 %s200, 1
      %s202 = scalar_select %p199, %s200, %s201
      %p205 = pneg %p199
      %p206 = scmp.eq.s32.totalorder %s22, 1
      %p207 = por %p205, %p206
      %p208 = scmp.ne.s32.totalorder %s200, %s203
      %p209 = scmp.eq.s32.totalorder %s22, 0
      %p210 = por %p208, %p209
      %p211 = scmp.ne.s32.totalorder %s200, %s203
      %p212 = scmp.eq.s32.totalorder %s27, 1
      %p213 = por %p211, %p212
      %p214 = scmp.ne.s32.totalorder %s203, %s204
      %p215 = scmp.eq.s32.totalorder %s27, 0
      %p216 = por %p214, %p215
      %p217 = scmp.ne.s32.totalorder %s203, %s204
      %p218 = scmp.eq.s32.totalorder %s28, 1
      %p219 = por %p217, %p218
      %p221 = scmp.ne.s32.totalorder %s204, %s220
      %p222 = scmp.eq.s32.totalorder %s28, 0
      %p223 = por %p221, %p222
      %p224 = scmp.le.s32.totalorder 1, %s22
      %p225 = scmp.lt.s32.totalorder %s22, 3
      %p226 = pnand %p224, %p225
      %p227 = pneg %p226
      // Predicated region
      $region9: #{tpu_custom_call.1} parent=5 // pred_check
        _
      $region10: #{tpu_custom_call.1} parent=5 // pred_check_branch
        %229 = sbr.rel (%p226) target = $region12
      $region11: #{tpu_custom_call.1} parent=5 // pred_region
        %s230 = ssub.s32 %s22, 1
        // Predicated region
        $region13: #{tpu_custom_call.1} parent=11 // pred_check
          %p231 = pneg %p146
        $region14: #{tpu_custom_call.1} parent=11 // pred_check_branch
          %233 = sbr.rel (%p231) target = $region16
        $region15: #{tpu_custom_call.1} parent=11 // pred_region
          %s235 = ssub.s32 256, 256
          %236 = vsyncadd [#allocation13], %s235
          %s237 = sshll.u32 [#allocation12], 4
          %s238 = int_to_ptr.vmem [resolvable:$true] %s237
          %243 = dma.hbm_to_vmem [thread:$0]  %s3, 256, %s238, [#allocation13], 128, 128, 8
        $region16: #{tpu_custom_call.1} parent=11 // pred_fallthru
          _
        // Predicated region
        $region17: #{tpu_custom_call.1} parent=11 // pred_check
          %p244 = pneg %p167
        $region18: #{tpu_custom_call.1} parent=11 // pred_check_branch
          %246 = sbr.rel (%p244) target = $region20
        $region19: #{tpu_custom_call.1} parent=11 // pred_region
          %s248 = ssub.s32 384, 384
          %249 = vsyncadd [#allocation13], %s248
          %s250 = sshll.u32 [#allocation14], 4
          %s251 = int_to_ptr.vmem [resolvable:$true] %s250
          %256 = dma.hbm_to_vmem [thread:$0]  %s4, 384, %s251, [#allocation13], 128, 128, 8
        $region20: #{tpu_custom_call.1} parent=11 // pred_fallthru
          _
        // Predicated region
        $region21: #{tpu_custom_call.1} parent=11 // pred_check
          %p257 = pneg %p188
        $region22: #{tpu_custom_call.1} parent=11 // pred_check_branch
          %259 = sbr.rel (%p257) target = $region24
        $region23: #{tpu_custom_call.1} parent=11 // pred_region
          _
        $region24: #{tpu_custom_call.1} parent=11 // pred_fallthru
          _
      $region12: #{tpu_custom_call.1} parent=5 // pred_fallthru
        _
      %p260 = scmp.lt.s32.totalorder %s22, 2
      // Predicated region
      $region25: #{tpu_custom_call.1} parent=5 // pred_check
        %p261 = pneg %p260
      $region26: #{tpu_custom_call.1} parent=5 // pred_check_branch
        %263 = sbr.rel (%p261) target = $region28
      $region27: #{tpu_custom_call.1} parent=5 // pred_region
        // Predicated region
        $region29: #{tpu_custom_call.1} parent=27 // pred_check
          %p264 = pneg %p63
        $region30: #{tpu_custom_call.1} parent=27 // pred_check_branch
          %266 = sbr.rel (%p264) target = $region32
        $region31: #{tpu_custom_call.1} parent=27 // pred_region
          %s267 = sand.u32 %s53, 1
          %s268 = scalar_lea.sflag [#allocation7], %s267
          %s269 = sand.u32 %s53, 1
          %s270 = smul.addr %s269, 8
          %s271 = scalar_lea.vmem [#allocation6], %s270
          %s273 = ssub.s32 128, 128
          %274 = vsyncadd %s268, %s273
          %s275 = sadd.s32 %s30, %s29
          %s276 = smul.addr %s275, 128
          %s277 = scalar_lea.hbm %s0, %s276
          %s279 = sshll.u32 %s271, 4
          %s280 = int_to_ptr.vmem [resolvable:$true] %s279
          %282 = dma.hbm_to_vmem [thread:$0]  %s277, 128, %s280, %s268
        $region32: #{tpu_custom_call.1} parent=27 // pred_fallthru
          _
        // Predicated region
        $region33: #{tpu_custom_call.1} parent=27 // pred_check
          %p283 = pneg %p91
        $region34: #{tpu_custom_call.1} parent=27 // pred_check_branch
          %285 = sbr.rel (%p283) target = $region36
        $region35: #{tpu_custom_call.1} parent=27 // pred_region
          %s286 = sand.u32 %s22, 1
          %s287 = scalar_lea.sflag [#allocation10], %s286
          %s288 = sand.u32 %s81, 1
          %s289 = smul.addr %s288, 8
          %s290 = scalar_lea.vmem [#allocation9], %s289
          %s292 = ssub.s32 128, 128
          %293 = vsyncadd %s287, %s292
          %s294 = sadd.s32 %s31, %s29
          %s295 = smul.addr %s294, 128
          %s296 = scalar_lea.hbm %s1, %s295
          %s298 = sshll.u32 %s290, 4
          %s299 = int_to_ptr.vmem [resolvable:$true] %s298
          %301 = dma.hbm_to_vmem [thread:$0]  %s296, 128, %s299, %s287
        $region36: #{tpu_custom_call.1} parent=27 // pred_fallthru
          _
        // Predicated region
        $region37: #{tpu_custom_call.1} parent=27 // pred_check
          %p302 = pneg %p119
        $region38: #{tpu_custom_call.1} parent=27 // pred_check_branch
          %304 = sbr.rel (%p302) target = $region40
        $region39: #{tpu_custom_call.1} parent=27 // pred_region
          %s305 = sand.u32 %s22, 1
          %s306 = scalar_lea.sflag [#allocation10], %s305
          %s307 = sand.u32 %s109, 1
          %s308 = smul.addr %s307, 8
          %s309 = scalar_lea.vmem [#allocation11], %s308
          %s311 = ssub.s32 128, 128
          %312 = vsyncadd %s306, %s311
          %s313 = sadd.s32 %s31, %s29
          %s314 = smul.addr %s313, 128
          %s315 = scalar_lea.hbm %s2, %s314
          %s317 = sshll.u32 %s309, 4
          %s318 = int_to_ptr.vmem [resolvable:$true] %s317
          %320 = dma.hbm_to_vmem [thread:$0]  %s315, 128, %s318, %s306
        $region40: #{tpu_custom_call.1} parent=27 // pred_fallthru
          _
      $region28: #{tpu_custom_call.1} parent=5 // pred_fallthru
        _
      %p321 = scmp.le.s32.totalorder 1, %s22
      %p322 = scmp.lt.s32.totalorder %s22, 3
      %p323 = pnand %p321, %p322
      %p324 = pneg %p323
      // Predicated region
      $region41: #{tpu_custom_call.1} parent=5 // pred_check
        _
      $region42: #{tpu_custom_call.1} parent=5 // pred_check_branch
        %326 = sbr.rel (%p323) target = $region44
      $region43: #{tpu_custom_call.1} parent=5 // pred_region
        %s327 = ssub.s32 %s22, 1
        %s328 = sand.u32 %s56, 1
        %s329 = scalar_lea.sflag [#allocation7], %s328
        %s330 = sand.u32 %s56, 1
        %s331 = smul.addr %s330, 8
        %s332 = scalar_lea.vmem [#allocation6], %s331
        // Predicated region
        $region45: #{tpu_custom_call.1} parent=43 // pred_check
          %p333 = pneg %p69
        $region46: #{tpu_custom_call.1} parent=43 // pred_check_branch
          %335 = sbr.rel (%p333) target = $region48
        $region47: #{tpu_custom_call.1} parent=43 // pred_region
          %336 = dma.done %s329, 128
        $region48: #{tpu_custom_call.1} parent=43 // pred_fallthru
          _
        %s337 = sand.u32 %s27, 1
        %s338 = scalar_lea.sflag [#allocation10], %s337
        %s339 = sand.u32 %s84, 1
        %s340 = smul.addr %s339, 8
        %s341 = scalar_lea.vmem [#allocation9], %s340
        // Predicated region
        $region49: #{tpu_custom_call.1} parent=43 // pred_check
          %p342 = pneg %p97
        $region50: #{tpu_custom_call.1} parent=43 // pred_check_branch
          %344 = sbr.rel (%p342) target = $region52
        $region51: #{tpu_custom_call.1} parent=43 // pred_region
          %345 = dma.done %s338, 128
        $region52: #{tpu_custom_call.1} parent=43 // pred_fallthru
          _
        %s346 = sand.u32 %s27, 1
        %s347 = scalar_lea.sflag [#allocation10], %s346
        %s348 = sand.u32 %s112, 1
        %s349 = smul.addr %s348, 8
        %s350 = scalar_lea.vmem [#allocation11], %s349
        // Predicated region
        $region53: #{tpu_custom_call.1} parent=43 // pred_check
          %p351 = pneg %p125
        $region54: #{tpu_custom_call.1} parent=43 // pred_check_branch
          %353 = sbr.rel (%p351) target = $region56
        $region55: #{tpu_custom_call.1} parent=43 // pred_region
          %354 = dma.done %s347, 128
        $region56: #{tpu_custom_call.1} parent=43 // pred_fallthru
          _
        // Predicated region
        $region57: #{tpu_custom_call.1} parent=43 // pred_check
          %p355 = pneg %p146
        $region58: #{tpu_custom_call.1} parent=43 // pred_check_branch
          %357 = sbr.rel (%p355) target = $region60
        $region59: #{tpu_custom_call.1} parent=43 // pred_region
          %358 = dma.done [#allocation13], 256
        $region60: #{tpu_custom_call.1} parent=43 // pred_fallthru
          _
        // Predicated region
        $region61: #{tpu_custom_call.1} parent=43 // pred_check
          %p359 = pneg %p167
        $region62: #{tpu_custom_call.1} parent=43 // pred_check_branch
          %361 = sbr.rel (%p359) target = $region64
        $region63: #{tpu_custom_call.1} parent=43 // pred_region
          %362 = dma.done [#allocation13], 384
        $region64: #{tpu_custom_call.1} parent=43 // pred_fallthru
          _
        %s363 = sand.u32 %s56, 1
        %s364 = scalar_lea.sflag [#allocation7], %s363
        %s365 = sand.u32 %s56, 1
        %s366 = smul.addr %s365, 8
        %s367 = scalar_lea.vmem [#allocation6], %s366
        %p368 = pneg %p69
        %p369 = pneg %p66
        %s370 = sand.u32 %s27, 1
        %s371 = scalar_lea.sflag [#allocation10], %s370
        %s372 = sand.u32 %s84, 1
        %s373 = smul.addr %s372, 8
        %s374 = scalar_lea.vmem [#allocation9], %s373
        %p375 = pneg %p97
        %p376 = pneg %p94
        %s377 = sand.u32 %s27, 1
        %s378 = scalar_lea.sflag [#allocation10], %s377
        %s379 = sand.u32 %s112, 1
        %s380 = smul.addr %s379, 8
        %s381 = scalar_lea.vmem [#allocation11], %s380
        %p382 = pneg %p125
        %p383 = pneg %p122
        %p384 = pneg %p146
        %p385 = pneg %p143
        %p386 = pneg %p167
        %p387 = pneg %p164
        %p388 = pneg %p188
        %p389 = pneg %p185
        %p390 = pneg %p216
        %p391 = pneg %p213
        %s392 = sand.u32 %s203, 1
        %s393 = scalar_lea.sflag [#allocation8], %s392
        %s394 = sand.u32 %s203, 1
        %s395 = smul.addr %s394, 8
        %s396 = scalar_lea.vmem [#allocation15], %s395
        %p397 = scmp.eq.s32.totalorder %s34, 0
        // Predicated region
        $region65: #{tpu_custom_call.1} parent=43 // pred_check
          %p398 = pneg %p397
        $region66: #{tpu_custom_call.1} parent=43 // pred_check_branch
          %400 = sbr.rel (%p398) target = $region68
        $region67: #{tpu_custom_call.1} parent=43 // pred_region
          %vm401 = vcmask 7168
          %402 = vst.msk [vmem:[#allocation3] sm:$0xff] %vm401, -inf
          %403 = vst.msk [vmem:[#allocation4] sm:$0xff] %vm401, 0.0
          %vm404 = vcmask 97280
          %405 = vst.msk [vmem:[#allocation5] sm:$0xff] %vm404, 0.0
          %v406 = vld [vmem:[%s332] sm:$0xff]
          %v407 = vld [vmem:[#allocation12] sm:$0xff]
          %v408 = vld [vmem:[#allocation12 + $0x8] sm:$0xff]
          %vm409 = vcmask 130048
          %v411 = vsel %vm409, %v406, 0
          %413 = vmatprep.subr.mxu0 0.0
          %414 = vmatpush1.msra.mxu0 %v407
          %415 = vmatprep.subr.mxu0 0.0
          %416 = vmatpush1.msra.mxu0 %v408
          %417 = vmatprep.subr.mxu0 0.0
          %418 = vmatpush1.msra.mxu0 0.0
          %419 = vmatprep.subr.mxu0 0.0
          %420 = vmatpush1.msra.mxu0 0.0
          %421 = vmatprep.subr.mxu0 0.0
          %422 = vmatpush1.msra.mxu0 0.0
          %423 = vmatprep.subr.mxu0 0.0
          %424 = vmatpush1.msra.mxu0 0.0
          %425 = vmatprep.subr.mxu0 0.0
          %426 = vmatpush1.msra.mxu0 0.0
          %427 = vmatprep.subr.mxu0 0.0
          %428 = vmatpush1.msra.mxu0 0.0
          %429 = vmatprep.subr.mxu0 0.0
          %430 = vmatpush1.msra.mxu0 0.0
          %431 = vmatprep.subr.mxu0 0.0
          %432 = vmatpush1.msra.mxu0 0.0
          %433 = vmatprep.subr.mxu0 0.0
          %434 = vmatpush1.msra.mxu0 0.0
          %435 = vmatprep.subr.mxu0 0.0
          %436 = vmatpush1.msra.mxu0 0.0
          %437 = vmatprep.subr.mxu0 0.0
          %438 = vmatpush1.msra.mxu0 0.0
          %439 = vmatprep.subr.mxu0 0.0
          %440 = vmatpush1.msra.mxu0 0.0
          %441 = vmatprep.subr.mxu0 0.0
          %442 = vmatpush1.msra.mxu0 0.0
          %443 = vmatprep.subr.mxu0 0.0
          %444 = vmatpush1.msra.mxu0 0.0
          %445 = vmatprep.subr.mxu0 0.0
          %446 = vmatpush1.msra.mxu0 0.0
          %447 = vmatprep.subr.mxu0 0.0
          %448 = vmatpush1.msra.mxu0 0.0
          %449 = vmatprep.subr.mxu0 0.0
          %450 = vmatpush1.msra.mxu0 0.0
          %451 = vmatprep.subr.mxu0 0.0
          %452 = vmatpush1.msra.mxu0 0.0
          %453 = vmatprep.subr.mxu0 0.0
          %454 = vmatpush1.msra.mxu0 0.0
          %455 = vmatprep.subr.mxu0 0.0
          %456 = vmatpush1.msra.mxu0 0.0
          %457 = vmatprep.subr.mxu0 0.0
          %458 = vmatpush1.msra.mxu0 0.0
          %459 = vmatprep.subr.mxu0 0.0
          %460 = vmatpush1.msra.mxu0 0.0
          %461 = vmatprep.subr.mxu0 0.0
          %462 = vmatpush1.msra.mxu0 0.0
          %463 = vmatprep.subr.mxu0 0.0
          %464 = vmatpush1.msra.mxu0 0.0
          %465 = vmatprep.subr.mxu0 0.0
          %466 = vmatpush1.msra.mxu0 0.0
          %467 = vmatprep.subr.mxu0 0.0
          %468 = vmatpush1.msra.mxu0 0.0
          %469 = vmatprep.subr.mxu0 0.0
          %470 = vmatpush1.msra.mxu0 0.0
          %471 = vmatprep.subr.mxu0 0.0
          %472 = vmatpush1.msra.mxu0 0.0
          %473 = vmatprep.subr.mxu0 0.0
          %474 = vmatpush1.msra.mxu0 0.0
          %475 = vmatprep.subr.mxu0 0.0
          %476 = vmatpush1.msra.mxu0 0.0
          %477 = vmatprep.mubr.f32.mxu0 0.0
          %478 = vmatmul.mubr.f32.gmra.mrb[0].mxu0 %v411
          %v479 = vpop.f32.mrb[0].mxu0
          %v480 = vadd.f32 0.0, %v479
          %v481 = vpop.f32.mrb[0].mxu0
          %482 = vdwg.mxu0
          %vm483 = vcmask 261120
          %484 = vst.msk [vmem:[#allocation2] sm:$0xff] %vm483, %v480
        $region68: #{tpu_custom_call.1} parent=43 // pred_fallthru
          _
        %v485 = vld [vmem:[%s341] sm:$0xff]
        %v486 = vld [vmem:[#allocation14] sm:$0xff]
        %v487 = vld [vmem:[#allocation14 + $0x8] sm:$0xff]
        %v488 = vld [vmem:[#allocation14 + $0x10] sm:$0xff]
        %vm489 = vcmask 195584
        %v491 = vsel %vm489, %v485, 0
        %493 = vmatprep.subr.mxu0 0.0
        %494 = vmatpush1.msra.mxu0 %v486
        %495 = vmatprep.subr.mxu0 0.0
        %496 = vmatpush1.msra.mxu0 %v487
        %497 = vmatprep.subr.mxu0 0.0
        %498 = vmatpush1.msra.mxu0 %v488
        %499 = vmatprep.subr.mxu0 0.0
        %500 = vmatpush1.msra.mxu0 0.0
        %501 = vmatprep.subr.mxu0 0.0
        %502 = vmatpush1.msra.mxu0 0.0
        %503 = vmatprep.subr.mxu0 0.0
        %504 = vmatpush1.msra.mxu0 0.0
        %505 = vmatprep.subr.mxu0 0.0
        %506 = vmatpush1.msra.mxu0 0.0
        %507 = vmatprep.subr.mxu0 0.0
        %508 = vmatpush1.msra.mxu0 0.0
        %509 = vmatprep.subr.mxu0 0.0
        %510 = vmatpush1.msra.mxu0 0.0
        %511 = vmatprep.subr.mxu0 0.0
        %512 = vmatpush1.msra.mxu0 0.0
        %513 = vmatprep.subr.mxu0 0.0
        %514 = vmatpush1.msra.mxu0 0.0
        %515 = vmatprep.subr.mxu0 0.0
        %516 = vmatpush1.msra.mxu0 0.0
        %517 = vmatprep.subr.mxu0 0.0
        %518 = vmatpush1.msra.mxu0 0.0
        %519 = vmatprep.subr.mxu0 0.0
        %520 = vmatpush1.msra.mxu0 0.0
        %521 = vmatprep.subr.mxu0 0.0
        %522 = vmatpush1.msra.mxu0 0.0
        %523 = vmatprep.subr.mxu0 0.0
        %524 = vmatpush1.msra.mxu0 0.0
        %525 = vmatprep.subr.mxu0 0.0
        %526 = vmatpush1.msra.mxu0 0.0
        %527 = vmatprep.subr.mxu0 0.0
        %528 = vmatpush1.msra.mxu0 0.0
        %529 = vmatprep.subr.mxu0 0.0
        %530 = vmatpush1.msra.mxu0 0.0
        %531 = vmatprep.subr.mxu0 0.0
        %532 = vmatpush1.msra.mxu0 0.0
        %533 = vmatprep.subr.mxu0 0.0
        %534 = vmatpush1.msra.mxu0 0.0
        %535 = vmatprep.subr.mxu0 0.0
        %536 = vmatpush1.msra.mxu0 0.0
        %537 = vmatprep.subr.mxu0 0.0
        %538 = vmatpush1.msra.mxu0 0.0
        %539 = vmatprep.subr.mxu0 0.0
        %540 = vmatpush1.msra.mxu0 0.0
        %541 = vmatprep.subr.mxu0 0.0
        %542 = vmatpush1.msra.mxu0 0.0
        %543 = vmatprep.subr.mxu0 0.0
        %544 = vmatpush1.msra.mxu0 0.0
        %545 = vmatprep.subr.mxu0 0.0
        %546 = vmatpush1.msra.mxu0 0.0
        %547 = vmatprep.subr.mxu0 0.0
        %548 = vmatpush1.msra.mxu0 0.0
        %549 = vmatprep.subr.mxu0 0.0
        %550 = vmatpush1.msra.mxu0 0.0
        %551 = vmatprep.subr.mxu0 0.0
        %552 = vmatpush1.msra.mxu0 0.0
        %553 = vmatprep.subr.mxu0 0.0
        %554 = vmatpush1.msra.mxu0 0.0
        %555 = vmatprep.subr.mxu0 0.0
        %556 = vmatpush1.msra.mxu0 0.0
        %557 = vmatprep.mubr.f32.mxu0 0.0
        %558 = vmatmul.mubr.f32.gmra.mrb[0].mxu0 %v491
        %v559 = vpop.f32.mrb[0].mxu0
        %v560 = vadd.f32 0.0, %v559
        %v561 = vpop.f32.mrb[0].mxu0
        %562 = vdwg.mxu0
        %v563 = vld [vmem:[#allocation2] sm:$0xff]
        %v564 = vld [vmem:[%s5] sm:$0x1]
        %v566 = vcombine.high %v563, %v563
        %v568 = vunpack.c.l.s4 1966171168
        %v569 = vunpack.c.0.s8 %v568
        %v570 = vlaneseq
        %v571 = vshrl.u32 %v570, 7
        %v572 = vsub.s32 %v569, %v571
        %v573 = vrot.slane %v563, %v572
        %v575 = vunpack.c.l.s4 1966171168
        %v576 = vunpack.c.0.s8 %v575
        %v577 = vlaneseq
        %v578 = vshrl.u32 %v577, 7
        %v579 = vsub.s32 %v576, %v578
        %v580 = vrot.slane %v566, %v579
        %v581 = vcombine.high %v573, %v573
        %v582 = vcombine.high %v580, %v580
        %v584 = vunpack.c.l.s4 1966171168
        %v585 = vunpack.c.0.s8 %v584
        %v586 = vlaneseq
        %v587 = vshrl.u32 %v586, 7
        %v588 = vsub.s32 %v585, %v587
        %v589 = vrot.slane %v573, %v588
        %v591 = vunpack.c.l.s4 1966171168
        %v592 = vunpack.c.0.s8 %v591
        %v593 = vlaneseq
        %v594 = vshrl.u32 %v593, 7
        %v595 = vsub.s32 %v592, %v594
        %v596 = vrot.slane %v580, %v595
        %v598 = vunpack.c.l.s4 1966171168
        %v599 = vunpack.c.0.s8 %v598
        %v600 = vlaneseq
        %v601 = vshrl.u32 %v600, 7
        %v602 = vsub.s32 %v599, %v601
        %v603 = vrot.slane %v581, %v602
        %v605 = vunpack.c.l.s4 1966171168
        %v606 = vunpack.c.0.s8 %v605
        %v607 = vlaneseq
        %v608 = vshrl.u32 %v607, 7
        %v609 = vsub.s32 %v606, %v608
        %v610 = vrot.slane %v582, %v609
        %v611 = vcombine.high %v589, %v589
        %v612 = vcombine.high %v596, %v596
        %v613 = vcombine.high %v603, %v603
        %v614 = vcombine.high %v610, %v610
        %v615 = vlaneseq
        %v616 = vshrl.u32 %v615, 7
        %v617 = vsub.s32 0, %v616
        %v618 = vrot.slane %v589, %v617
        %v619 = vlaneseq
        %v620 = vshrl.u32 %v619, 7
        %v621 = vsub.s32 0, %v620
        %v622 = vrot.slane %v603, %v621
        %v623 = vlaneseq
        %v624 = vshrl.u32 %v623, 7
        %v625 = vsub.s32 0, %v624
        %v626 = vrot.slane %v611, %v625
        %v627 = vlaneseq
        %v628 = vshrl.u32 %v627, 7
        %v629 = vsub.s32 0, %v628
        %v630 = vrot.slane %v613, %v629
        %v631 = vlaneseq
        %v632 = vshrl.u32 %v631, 7
        %v633 = vsub.s32 0, %v632
        %v634 = vrot.slane %v596, %v633
        %v635 = vlaneseq
        %v636 = vshrl.u32 %v635, 7
        %v637 = vsub.s32 0, %v636
        %v638 = vrot.slane %v610, %v637
        %v639 = vlaneseq
        %v640 = vshrl.u32 %v639, 7
        %v641 = vsub.s32 0, %v640
        %v642 = vrot.slane %v612, %v641
        %v643 = vlaneseq
        %v644 = vshrl.u32 %v643, 7
        %v645 = vsub.s32 0, %v644
        %v646 = vrot.slane %v614, %v645
        %v655 = vadd.f32 %v618, %v560
        %v656 = vadd.f32 %v622, %v560
        %v657 = vadd.f32 %v626, %v560
        %v658 = vadd.f32 %v630, %v560
        %v659 = vadd.f32 %v634, %v560
        %v660 = vadd.f32 %v638, %v560
        %v661 = vadd.f32 %v642, %v560
        %v662 = vadd.f32 %v646, %v560
        %v663 = vtanh.pop %v655
        %v664 = vtanh.pop %v656
        %v665 = vtanh.pop %v657
        %v666 = vtanh.pop %v658
        %v667 = vtanh.pop %v659
        %v668 = vtanh.pop %v660
        %v669 = vtanh.pop %v661
        %v670 = vtanh.pop %v662
        %v672 = vlaneseq
        %v673 = vshrl.u32 %v672, 7
        %v674 = vsub.s32 0, %v673
        %v675 = vrot.slane %v564, %v674
        %v677 = vmul.f32 %v663, %v675
        %v678 = vmul.f32 %v664, %v675
        %v679 = vmul.f32 %v665, %v675
        %v680 = vmul.f32 %v666, %v675
        %v681 = vmul.f32 %v667, %v675
        %v682 = vmul.f32 %v668, %v675
        %v683 = vmul.f32 %v669, %v675
        %v684 = vmul.f32 %v670, %v675
        %vm685 = vcmask 261120
        %v686 = vsel %vm685, %v677, 0.0
        %687 = vadd.xlane.f32.xlu0 %v686
        %v688 = vpop.xlane.xlu0 %687
        %v689 = vsel %vm685, %v678, 0.0
        %690 = vadd.xlane.f32.xlu0 %v689
        %v691 = vpop.xlane.xlu0 %690
        %v692 = vsel %vm685, %v679, 0.0
        %693 = vadd.xlane.f32.xlu0 %v692
        %v694 = vpop.xlane.xlu0 %693
        %v695 = vsel %vm685, %v680, 0.0
        %696 = vadd.xlane.f32.xlu0 %v695
        %v697 = vpop.xlane.xlu0 %696
        %v698 = vsel %vm685, %v681, 0.0
        %699 = vadd.xlane.f32.xlu0 %v698
        %v700 = vpop.xlane.xlu0 %699
        %v701 = vsel %vm685, %v682, 0.0
        %702 = vadd.xlane.f32.xlu0 %v701
        %v703 = vpop.xlane.xlu0 %702
        %v704 = vsel %vm685, %v683, 0.0
        %705 = vadd.xlane.f32.xlu0 %v704
        %v706 = vpop.xlane.xlu0 %705
        %v707 = vsel %vm685, %v684, 0.0
        %708 = vadd.xlane.f32.xlu0 %v707
        %v709 = vpop.xlane.xlu0 %708
        %v710 = vadd.f32 %v688, 0.0
        %v711 = vadd.f32 %v691, 0.0
        %v712 = vadd.f32 %v694, 0.0
        %v713 = vadd.f32 %v697, 0.0
        %v714 = vadd.f32 %v700, 0.0
        %v715 = vadd.f32 %v703, 0.0
        %v716 = vadd.f32 %v706, 0.0
        %v717 = vadd.f32 %v709, 0.0
        %v718 = vld [vmem:[#allocation3] sm:$0xff]
        %v727 = vlaneseq
        %v728 = vand.u32 %v727, 127
        %v729 = vlaneseq
        %v730 = vshrl.u32 %v729, 7
        %v731 = vsub.s32 %v728, %v730
        %v732 = vrot.slane %v710, %v731
        %v733 = vlaneseq
        %v734 = vshrl.u32 %v733, 7
        %v735 = vsub.s32 %v728, %v734
        %v736 = vrot.slane %v711, %v735
        %v737 = vlaneseq
        %v738 = vshrl.u32 %v737, 7
        %v739 = vsub.s32 %v728, %v738
        %v740 = vrot.slane %v712, %v739
        %v741 = vlaneseq
        %v742 = vshrl.u32 %v741, 7
        %v743 = vsub.s32 %v728, %v742
        %v744 = vrot.slane %v713, %v743
        %v745 = vlaneseq
        %v746 = vshrl.u32 %v745, 7
        %v747 = vsub.s32 %v728, %v746
        %v748 = vrot.slane %v714, %v747
        %v749 = vlaneseq
        %v750 = vshrl.u32 %v749, 7
        %v751 = vsub.s32 %v728, %v750
        %v752 = vrot.slane %v715, %v751
        %v753 = vlaneseq
        %v754 = vshrl.u32 %v753, 7
        %v755 = vsub.s32 %v728, %v754
        %v756 = vrot.slane %v716, %v755
        %v757 = vlaneseq
        %v758 = vshrl.u32 %v757, 7
        %v759 = vsub.s32 %v728, %v758
        %v760 = vrot.slane %v717, %v759
        %vm761 = vcmask 1041409
        %v762 = vsel %vm761, %v736, %v732
        %vm763 = vcmask 1042434
        %v764 = vsel %vm763, %v740, %v762
        %vm765 = vcmask 1043459
        %v766 = vsel %vm765, %v744, %v764
        %vm767 = vcmask 1044484
        %v768 = vsel %vm767, %v748, %v766
        %vm769 = vcmask 1045509
        %v770 = vsel %vm769, %v752, %v768
        %vm771 = vcmask 1046534
        %v772 = vsel %vm771, %v756, %v770
        %vm773 = vcmask 1047559
        %v774 = vsel %vm773, %v760, %v772
        %vm776 = vcmask 64512
        %v777 = vsel %vm776, %v774, -inf
        %778 = vmax.xlane.f32.xlu0 %v777
        %v779 = vpop.xlane.xlu0 %778
        %v780 = vmax.f32 %v718, %v779
        %v781 = vsub.f32 %v718, %v780
        %v782 = vmul.f32 %v781, 1.442695
        %v783 = vpow.pop %v782
        %785 = vset.pattern.permute.xlu0 0
        %786 = vperm.xlu0 %785, %v780
        %v787 = vpop.permute.xlu0 %786
        %v788 = vlaneseq
        %v789 = vshrl.u32 %v788, 7
        %v790 = vsub.s32 0, %v789
        %v791 = vrot.slane %v787, %v790
        %v792 = vlaneseq
        %v793 = vshrl.u32 %v792, 7
        %v794 = vsub.s32 1, %v793
        %v795 = vrot.slane %v787, %v794
        %v796 = vlaneseq
        %v797 = vshrl.u32 %v796, 7
        %v798 = vsub.s32 2, %v797
        %v799 = vrot.slane %v787, %v798
        %v800 = vlaneseq
        %v801 = vshrl.u32 %v800, 7
        %v802 = vsub.s32 3, %v801
        %v803 = vrot.slane %v787, %v802
        %v804 = vlaneseq
        %v805 = vshrl.u32 %v804, 7
        %v806 = vsub.s32 4, %v805
        %v807 = vrot.slane %v787, %v806
        %v808 = vlaneseq
        %v809 = vshrl.u32 %v808, 7
        %v810 = vsub.s32 5, %v809
        %v811 = vrot.slane %v787, %v810
        %v812 = vlaneseq
        %v813 = vshrl.u32 %v812, 7
        %v814 = vsub.s32 6, %v813
        %v815 = vrot.slane %v787, %v814
        %v816 = vlaneseq
        %v817 = vshrl.u32 %v816, 7
        %v818 = vsub.s32 7, %v817
        %v819 = vrot.slane %v787, %v818
        %v828 = vsub.f32 %v710, %v791
        %v829 = vsub.f32 %v711, %v795
        %v830 = vsub.f32 %v712, %v799
        %v831 = vsub.f32 %v713, %v803
        %v832 = vsub.f32 %v714, %v807
        %v833 = vsub.f32 %v715, %v811
        %v834 = vsub.f32 %v716, %v815
        %v835 = vsub.f32 %v717, %v819
        %v836 = vmul.f32 %v828, 1.442695
        %v837 = vpow.pop %v836
        %v838 = vmul.f32 %v829, 1.442695
        %v839 = vpow.pop %v838
        %v840 = vmul.f32 %v830, 1.442695
        %v841 = vpow.pop %v840
        %v842 = vmul.f32 %v831, 1.442695
        %v843 = vpow.pop %v842
        %v844 = vmul.f32 %v832, 1.442695
        %v845 = vpow.pop %v844
        %v846 = vmul.f32 %v833, 1.442695
        %v847 = vpow.pop %v846
        %v848 = vmul.f32 %v834, 1.442695
        %v849 = vpow.pop %v848
        %v850 = vmul.f32 %v835, 1.442695
        %v851 = vpow.pop %v850
        %v852 = vld [vmem:[#allocation4] sm:$0xff]
        %v853 = vmul.f32 %v783, %v852
        %862 = vset.pattern.permute.xlu0 0
        %863 = vperm.xlu0 %862, %v837
        %v864 = vpop.permute.xlu0 %863
        %865 = vset.pattern.permute.xlu0 0
        %866 = vperm.xlu0 %865, %v839
        %v867 = vpop.permute.xlu0 %866
        %868 = vset.pattern.permute.xlu0 0
        %869 = vperm.xlu0 %868, %v841
        %v870 = vpop.permute.xlu0 %869
        %871 = vset.pattern.permute.xlu0 0
        %872 = vperm.xlu0 %871, %v843
        %v873 = vpop.permute.xlu0 %872
        %874 = vset.pattern.permute.xlu0 0
        %875 = vperm.xlu0 %874, %v845
        %v876 = vpop.permute.xlu0 %875
        %877 = vset.pattern.permute.xlu0 0
        %878 = vperm.xlu0 %877, %v847
        %v879 = vpop.permute.xlu0 %878
        %880 = vset.pattern.permute.xlu0 0
        %881 = vperm.xlu0 %880, %v849
        %v882 = vpop.permute.xlu0 %881
        %883 = vset.pattern.permute.xlu0 0
        %884 = vperm.xlu0 %883, %v851
        %v885 = vpop.permute.xlu0 %884
        %v886 = vlaneseq
        %v887 = vshrl.u32 %v886, 7
        %v888 = vsub.s32 %v728, %v887
        %v889 = vrot.slane %v864, %v888
        %v890 = vlaneseq
        %v891 = vshrl.u32 %v890, 7
        %v892 = vsub.s32 %v728, %v891
        %v893 = vrot.slane %v867, %v892
        %v894 = vlaneseq
        %v895 = vshrl.u32 %v894, 7
        %v896 = vsub.s32 %v728, %v895
        %v897 = vrot.slane %v870, %v896
        %v898 = vlaneseq
        %v899 = vshrl.u32 %v898, 7
        %v900 = vsub.s32 %v728, %v899
        %v901 = vrot.slane %v873, %v900
        %v902 = vlaneseq
        %v903 = vshrl.u32 %v902, 7
        %v904 = vsub.s32 %v728, %v903
        %v905 = vrot.slane %v876, %v904
        %v906 = vlaneseq
        %v907 = vshrl.u32 %v906, 7
        %v908 = vsub.s32 %v728, %v907
        %v909 = vrot.slane %v879, %v908
        %v910 = vlaneseq
        %v911 = vshrl.u32 %v910, 7
        %v912 = vsub.s32 %v728, %v911
        %v913 = vrot.slane %v882, %v912
        %v914 = vlaneseq
        %v915 = vshrl.u32 %v914, 7
        %v916 = vsub.s32 %v728, %v915
        %v917 = vrot.slane %v885, %v916
        %v918 = vsel %vm761, %v893, %v889
        %v919 = vsel %vm763, %v897, %v918
        %v920 = vsel %vm765, %v901, %v919
        %v921 = vsel %vm767, %v905, %v920
        %v922 = vsel %vm769, %v909, %v921
        %v923 = vsel %vm771, %v913, %v922
        %v924 = vsel %vm773, %v917, %v923
        %v926 = vsel %vm776, %v924, 0.0
        %927 = vadd.xlane.f32.xlu0 %v926
        %v928 = vpop.xlane.xlu0 %927
        %v929 = vadd.f32 %v853, %v928
        %vm930 = vcmask 7168
        %931 = vst.msk [vmem:[#allocation4] sm:$0xff] %vm930, %v929
        %v932 = vld [vmem:[#allocation5] sm:$0xff]
        %934 = vset.pattern.permute.xlu0 0
        %935 = vperm.xlu0 %934, %v783
        %v936 = vpop.permute.xlu0 %935
        %v938 = vmul.f32 %v936, %v932
        %v939 = vld [vmem:[%s350] sm:$0xff]
        %v940 = vsel %vm776, %v924, 0
        %942 = vmatprep.subr.mxu0 0.0
        %943 = vmatpush1.msra.mxu0 %v939
        %944 = vmatprep.subr.mxu0 0.0
        %945 = vmatpush1.msra.mxu0 0.0
        %946 = vmatprep.subr.mxu0 0.0
        %947 = vmatpush1.msra.mxu0 0.0
        %948 = vmatprep.subr.mxu0 0.0
        %949 = vmatpush1.msra.mxu0 0.0
        %950 = vmatprep.subr.mxu0 0.0
        %951 = vmatpush1.msra.mxu0 0.0
        %952 = vmatprep.subr.mxu0 0.0
        %953 = vmatpush1.msra.mxu0 0.0
        %954 = vmatprep.subr.mxu0 0.0
        %955 = vmatpush1.msra.mxu0 0.0
        %956 = vmatprep.subr.mxu0 0.0
        %957 = vmatpush1.msra.mxu0 0.0
        %958 = vmatprep.subr.mxu0 0.0
        %959 = vmatpush1.msra.mxu0 0.0
        %960 = vmatprep.subr.mxu0 0.0
        %961 = vmatpush1.msra.mxu0 0.0
        %962 = vmatprep.subr.mxu0 0.0
        %963 = vmatpush1.msra.mxu0 0.0
        %964 = vmatprep.subr.mxu0 0.0
        %965 = vmatpush1.msra.mxu0 0.0
        %966 = vmatprep.subr.mxu0 0.0
        %967 = vmatpush1.msra.mxu0 0.0
        %968 = vmatprep.subr.mxu0 0.0
        %969 = vmatpush1.msra.mxu0 0.0
        %970 = vmatprep.subr.mxu0 0.0
        %971 = vmatpush1.msra.mxu0 0.0
        %972 = vmatprep.subr.mxu0 0.0
        %973 = vmatpush1.msra.mxu0 0.0
        %974 = vmatprep.subr.mxu0 0.0
        %975 = vmatpush1.msra.mxu0 0.0
        %976 = vmatprep.subr.mxu0 0.0
        %977 = vmatpush1.msra.mxu0 0.0
        %978 = vmatprep.subr.mxu0 0.0
        %979 = vmatpush1.msra.mxu0 0.0
        %980 = vmatprep.subr.mxu0 0.0
        %981 = vmatpush1.msra.mxu0 0.0
        %982 = vmatprep.subr.mxu0 0.0
        %983 = vmatpush1.msra.mxu0 0.0
        %984 = vmatprep.subr.mxu0 0.0
        %985 = vmatpush1.msra.mxu0 0.0
        %986 = vmatprep.subr.mxu0 0.0
        %987 = vmatpush1.msra.mxu0 0.0
        %988 = vmatprep.subr.mxu0 0.0
        %989 = vmatpush1.msra.mxu0 0.0
        %990 = vmatprep.subr.mxu0 0.0
        %991 = vmatpush1.msra.mxu0 0.0
        %992 = vmatprep.subr.mxu0 0.0
        %993 = vmatpush1.msra.mxu0 0.0
        %994 = vmatprep.subr.mxu0 0.0
        %995 = vmatpush1.msra.mxu0 0.0
        %996 = vmatprep.subr.mxu0 0.0
        %997 = vmatpush1.msra.mxu0 0.0
        %998 = vmatprep.subr.mxu0 0.0
        %999 = vmatpush1.msra.mxu0 0.0
        %1000 = vmatprep.subr.mxu0 0.0
        %1001 = vmatpush1.msra.mxu0 0.0
        %1002 = vmatprep.subr.mxu0 0.0
        %1003 = vmatpush1.msra.mxu0 0.0
        %1004 = vmatprep.subr.mxu0 0.0
        %1005 = vmatpush1.msra.mxu0 0.0
        %1006 = vmatprep.mubr.f32.mxu0 0.0
        %1007 = vmatmul.mubr.f32.gmra.mrb[0].mxu0 %v940
        %v1008 = vpop.f32.mrb[0].mxu0
        %v1009 = vadd.f32 0.0, %v1008
        %v1010 = vpop.f32.mrb[0].mxu0
        %1011 = vdwg.mxu0
        %v1012 = vadd.f32 %v938, %v1009
        %vm1013 = vcmask 97280
        %1014 = vst.msk [vmem:[#allocation5] sm:$0xff] %vm1013, %v1012
        %1015 = vst.msk [vmem:[#allocation3] sm:$0xff] %vm930, %v780
        // Predicated region
        $region69: #{tpu_custom_call.1} parent=43 // pred_check
          %p1016 = pneg %p397
        $region70: #{tpu_custom_call.1} parent=43 // pred_check_branch
          %1018 = sbr.rel (%p1016) target = $region72
        $region71: #{tpu_custom_call.1} parent=43 // pred_region
          %v1019 = vld [vmem:[#allocation5] sm:$0xff]
          %v1020 = vld [vmem:[#allocation4] sm:$0xff]
          %1022 = vset.pattern.permute.xlu0 0
          %1023 = vperm.xlu0 %1022, %v1020
          %v1024 = vpop.permute.xlu0 %1023
          %v1026 = vrcp.pop %v1024
          %v1027 = vmul.f32 %v1019, %v1026
          %1028 = vst.msk [vmem:[%s396] sm:$0xff] %vm1013, %v1027
        $region72: #{tpu_custom_call.1} parent=43 // pred_fallthru
          _
        %s1029 = sand.u32 %s203, 1
        %s1030 = scalar_lea.sflag [#allocation8], %s1029
        %s1031 = sand.u32 %s203, 1
        %s1032 = smul.addr %s1031, 8
        %s1033 = scalar_lea.vmem [#allocation15], %s1032
        // Predicated region
        $region73: #{tpu_custom_call.1} parent=43 // pred_check
          %p1034 = pneg %p213
        $region74: #{tpu_custom_call.1} parent=43 // pred_check_branch
          %1036 = sbr.rel (%p1034) target = $region76
        $region75: #{tpu_custom_call.1} parent=43 // pred_region
          %s1038 = ssub.s32 128, 128
          %1039 = vsyncadd %s1030, %s1038
          %s1040 = sadd.s32 %s33, %s32
          %s1041 = smul.addr %s1040, 128
          %s1042 = scalar_lea.hbm %s6, %s1041
          %s1044 = sshll.u32 %s1033, 4
          %s1045 = int_to_ptr.vmem [resolvable:$true] %s1044
          %1047 = dma.vmem_to_hbm [thread:$0]  %s1045, 128, %s1042, %s1030
        $region76: #{tpu_custom_call.1} parent=43 // pred_fallthru
          _
      $region44: #{tpu_custom_call.1} parent=5 // pred_fallthru
        _
      %p1048 = scmp.le.s32.totalorder 2, %s22
      // Predicated region
      $region77: #{tpu_custom_call.1} parent=5 // pred_check
        %p1049 = pneg %p1048
      $region78: #{tpu_custom_call.1} parent=5 // pred_check_branch
        %1051 = sbr.rel (%p1049) target = $region80
      $region79: #{tpu_custom_call.1} parent=5 // pred_region
        %s1052 = ssub.s32 %s22, 2
        // Predicated region
        $region81: #{tpu_custom_call.1} parent=79 // pred_check
          %p1053 = pneg %p219
        $region82: #{tpu_custom_call.1} parent=79 // pred_check_branch
          %1055 = sbr.rel (%p1053) target = $region84
        $region83: #{tpu_custom_call.1} parent=79 // pred_region
          %s1056 = sand.u32 %s204, 1
          %s1057 = scalar_lea.sflag [#allocation8], %s1056
          %s1058 = sand.u32 %s204, 1
          %s1059 = smul.addr %s1058, 8
          %s1060 = scalar_lea.vmem [#allocation15], %s1059
          %1061 = dma.done %s1057, 128
        $region84: #{tpu_custom_call.1} parent=79 // pred_fallthru
          _
      $region80: #{tpu_custom_call.1} parent=5 // pred_fallthru
        _
    $region6: #{tpu_custom_call.1} parent=1 // loop_footer
      %s26 = sadd.s32 1, %s22
    $region7: #{tpu_custom_call.1} parent=1 // loop_footer_branch
      %21 = sbr.rel target = $region3
    $region8: #{tpu_custom_call.1} parent=1 // loop_exit
      _
    %1062 = vsyncpa [#allocation7], 1
    %s1063 = scalar_lea.sflag [#allocation7], 1
    %1064 = vsyncpa %s1063, 1
    %1065 = vsyncpa [#allocation10], 1
    %s1066 = scalar_lea.sflag [#allocation10], 1
    %1067 = vsyncpa %s1066, 1
    %1068 = vsyncpa [#allocation13], 1
    %1069 = vsyncpa [#allocation8], 1
    %s1070 = scalar_lea.sflag [#allocation8], 1
    %1071 = vsyncpa %s1070, 1

</llo_original>
